<compile_context>
chip_gen: v6e
topology: v6e:2x2x1
jax: 0.10.0
libtpu: 0.0.40
codegen_flags: <defaults>
</compile_context>

<pallas_src>
import functools

import jax
import jax.numpy as jnp
from jax.experimental import pallas as pl
from jax.experimental.pallas import tpu as pltpu


def _pick_tile(n, target, align=128):
    """Largest multiple of `align` that divides n and is <= target; else full n."""
    if n <= target:
        return n
    t = (min(target, n) // align) * align
    while t >= align:
        if n % t == 0:
            return t
        t -= align
    return n


# ----------------------------------------------------------------------------
# Kernel 1: negative pairwise squared distances (rank-equivalent) for the k-NN.
# ----------------------------------------------------------------------------
def _neg_dist_kernel(xq_ref, xall_ref, sq_ref, out_ref):
    # xq_ref  : (1, C, tq) bf16  query points (channels-first)
    # xall_ref: (1, C, N)  bf16  all points of this batch
    # sq_ref  : (1, 1, N)  f32   ||x_j||^2 per point (precomputed exactly in f32)
    # out_ref : (1, tq, N) f32   rank-equivalent negative squared distance
    inner = jax.lax.dot_general(                                          # x_q . x_j on MXU
        xq_ref[0], xall_ref[0], (((0,), (0,)), ((), ())),
        preferred_element_type=jnp.float32)                               # (tq, N)
    # Full neg-distance is 2*inner - ||x_q||^2 - ||x_j||^2.  The per-query constant
    # does not change per-row top-k ranking, so it is dropped; the diagonal (self)
    # entry remains the row maximum, preserving the reference's self-loop behavior.
    out_ref[0] = 2.0 * inner - sq_ref[0]


# ----------------------------------------------------------------------------
# Kernel 2: streaming EdgeConv (split 1x1 conv) + per-point max/min over K
#           + per-channel sum / sumsq partials for training-mode BatchNorm.
# ----------------------------------------------------------------------------
def _edge_stats_kernel(x_ref, xj_ref, wi_ref, wj_ref,
                       hmax_ref, hmin_ref, stats_ref, *, num_k):
    # x_ref    : (1, C, m)    bf16  center features (channels on sublanes, points on lanes)
    # xj_ref   : (1, K, C, m) bf16  gathered neighbor features (k on a leading dim)
    # wi_ref   : (C, C) bf16  W[:, :C] - W[:, C:]   (multiplies the centers, no gather)
    # wj_ref   : (C, C) bf16  W[:, C:]              (multiplies the neighbors)
    # hmax/hmin: (1, C, m) f32  per-point max / min over K of the pre-BN conv output
    # stats_ref: (1, C, 128) f32  lane 0 = per-channel sum, lane 1 = per-channel sumsq
    xt = x_ref[0]                                                         # (C, m)
    ci = jnp.dot(wi_ref[...], xt, preferred_element_type=jnp.float32)     # (C, m), once/point
    wj = wj_ref[...]
    c = ci.shape[0]
    hmax = None
    hmin = None
    s1 = jnp.zeros((c, 1), jnp.float32)
    s2 = jnp.zeros((c, 1), jnp.float32)
    # Streaming reduction over K: one (C, m) f32 tile live per step (m=512 keeps the
    # live set ~48 vregs -> no spills).  Each dot is (C,C)x(C,m): MXU output dim = m.
    for k in range(num_k):
        hk = jnp.dot(wj, xj_ref[0, k], preferred_element_type=jnp.float32) + ci
        hmax = hk if k == 0 else jnp.maximum(hmax, hk)
        hmin = hk if k == 0 else jnp.minimum(hmin, hk)
        s1 = s1 + jnp.sum(hk, axis=1, keepdims=True)                      # lane reduce (XLU)
        s2 = s2 + jnp.sum(hk * hk, axis=1, keepdims=True)
    hmax_ref[0] = hmax                                                    # lane-dense stores
    hmin_ref[0] = hmin
    stats_ref[...] = jnp.zeros_like(stats_ref)
    stats_ref[0, :, 0:1] = s1
    stats_ref[0, :, 1:2] = s2


# ----------------------------------------------------------------------------
# Kernel 3: finalize: BN affine + ReLU + max-over-K select + residual.
# ----------------------------------------------------------------------------
def _bn_relu_max_residual_kernel(hmax_ref, hmin_ref, x_ref, scale_ref, shift_ref,
                                 out_ref, *, res_scale):
    # Channels on sublanes, points on lanes -> every store is a full 128-lane vst.
    scale = scale_ref[...]                                                # (C, 1)
    shift = shift_ref[...]
    # BN+ReLU is per-channel monotone affine: max_k ReLU(s*h+t) = ReLU(s*max_k h + t)
    # if s >= 0, else ReLU(s*min_k h + t).  Exact, no recompute pass over edges.
    sel = jnp.where(scale >= 0.0, hmax_ref[0], hmin_ref[0])               # (C, tn)
    y = jnp.maximum(scale * sel + shift, 0.0)
    out_ref[0] = y + res_scale * x_ref[0]


# ----------------------------------------------------------------------------
# Wrapper: k-NN graph, neighbor gather, weight split, BN stats, tiling choices.
# ----------------------------------------------------------------------------
def res_dyn_block_2d(x_bcn, w, gamma, beta, *, k=9, dilation=1, res_scale=1.0,
                     edge_index=None, bn_eps=1e-5):
    """x_bcn: (B, C, N) float32, PyTorch layout. Returns (B, C, N) float32."""
    B, C, N = x_bcn.shape
    x32 = x_bcn.astype(jnp.float32)
    x_bf16 = x32.astype(jnp.bfloat16)

    # ---- dynamic graph: DenseDilatedKnnGraph (stochastic=False path) -------------
    if edge_index is None:
        # Query tile chosen so the (tq, N) f32 output block is ~2 MB: fits the scoped
        # VMEM defaults (16 MiB v5e / 32 MiB v6e,v7x) and gives deep pipelining plus
        # >=2 parallel steps for v7x's two TensorCores.
        tq = _pick_tile(N, max(128, min(512, (2 * 1024 * 1024) // max(N * 4, 1))))
        sq = jnp.sum(x32 * x32, axis=1, keepdims=True)                    # (B, 1, N), exact f32
        neg_dist = pl.pallas_call(
            _neg_dist_kernel,
            out_shape=jax.ShapeDtypeStruct((B, N, N), jnp.float32),
            grid=(B, N // tq),
            in_specs=[pl.BlockSpec((1, C, tq), lambda b, q: (b, 0, q)),
                      pl.BlockSpec((1, C, N), lambda b, q: (b, 0, 0)),
                      pl.BlockSpec((1, 1, N), lambda b, q: (b, 0, 0))],
            out_specs=pl.BlockSpec((1, tq, N), lambda b, q: (b, q, 0)),
            compiler_params=pltpu.CompilerParams(
                dimension_semantics=("parallel", "parallel")),
        )(x_bf16, x_bf16, sq)
        # TODO(synk): top_k has no clean Pallas TPU primitive; a fused streaming top-k
        # inside the distance kernel would avoid materializing the (B, N, N) matrix.
        _, nn_idx = jax.lax.top_k(neg_dist, k * dilation)                 # (B, N, k*d)
        nn_idx = nn_idx[..., ::dilation].astype(jnp.int32)                # (B, N, k)
    else:
        nn_idx = edge_index[0].astype(jnp.int32)                          # neighbors (B, N, K)
    K = int(nn_idx.shape[-1])

    # ---- neighbor gather (channels-first, K on a leading axis) -------------------
    # TODO(synk): an in-kernel gather from a VMEM-resident per-batch slab (with
    # scalar-prefetched nn_idx) would avoid materializing this (B, K, C, N) tensor.
    idx_t = jnp.transpose(nn_idx, (0, 2, 1))                              # (B, K, N)
    xj = jax.vmap(lambda xb, ib: jnp.take(xb, ib, axis=1))(x_bf16, idx_t)  # (B, C, K, N)
    xj = jnp.transpose(xj, (0, 2, 1, 3))                                  # (B, K, C, N)

    # ---- split the 1x1 conv weight:  h^T = Wi @ x_i^T + Wj @ x_j^T ---------------
    w32 = w.astype(jnp.float32)
    wi = (w32[:, :C] - w32[:, C:]).astype(jnp.bfloat16)                   # (C, C)
    wj = w32[:, C:].astype(jnp.bfloat16)                                  # (C, C)

    m = _pick_tile(N, 512)                     # point tile (lanes); 512 keeps vregs < 64
    T = N // m
    hmax, hmin, stats = pl.pallas_call(
        functools.partial(_edge_stats_kernel, num_k=K),
        out_shape=(jax.ShapeDtypeStruct((B, C, N), jnp.float32),
                   jax.ShapeDtypeStruct((B, C, N), jnp.float32),
                   jax.ShapeDtypeStruct((B, C, T * 128), jnp.float32)),
        grid=(B, T),
        in_specs=[pl.BlockSpec((1, C, m), lambda b, j: (b, 0, j)),
                  pl.BlockSpec((1, K, C, m), lambda b, j: (b, 0, 0, j)),
                  pl.BlockSpec((C, C), lambda b, j: (0, 0)),
                  pl.BlockSpec((C, C), lambda b, j: (0, 0))],
        out_specs=(pl.BlockSpec((1, C, m), lambda b, j: (b, 0, j)),
                   pl.BlockSpec((1, C, m), lambda b, j: (b, 0, j)),
                   pl.BlockSpec((1, C, 128), lambda b, j: (b, 0, j))),
        compiler_params=pltpu.CompilerParams(
            dimension_semantics=("parallel", "parallel")),   # per-tile partials -> parallel
    )(x_bf16, xj, wi, wj)

    # ---- BatchNorm batch statistics (training mode, biased variance) -------------
    stats = stats.reshape(B, C, T, 128)
    cnt = jnp.float32(K * B * N)
    s1 = jnp.sum(stats[..., 0], axis=(0, 2))                              # (C,)
    s2 = jnp.sum(stats[..., 1], axis=(0, 2))
    mean = s1 / cnt
    var = jnp.maximum(s2 / cnt - mean * mean, 0.0)
    scale = gamma.astype(jnp.float32) * jax.lax.rsqrt(var + bn_eps)
    shift = beta.astype(jnp.float32) - mean * scale
    # TODO(synk): BatchNorm running-stat (momentum) updates are not produced here.

    # ---- finalize: output directly in (B, C, N) layout, no wrapper transposes ----
    tn = _pick_tile(N, max(128, min(8192, (4 * 1024 * 1024) // max(C * 4, 1))))
    out = pl.pallas_call(
        functools.partial(_bn_relu_max_residual_kernel, res_scale=float(res_scale)),
        out_shape=jax.ShapeDtypeStruct((B, C, N), jnp.float32),
        grid=(B, N // tn),
        in_specs=[pl.BlockSpec((1, C, tn), lambda b, j: (b, 0, j)),
                  pl.BlockSpec((1, C, tn), lambda b, j: (b, 0, j)),
                  pl.BlockSpec((1, C, tn), lambda b, j: (b, 0, j)),
                  pl.BlockSpec((C, 1), lambda b, j: (0, 0)),
                  pl.BlockSpec((C, 1), lambda b, j: (0, 0))],
        out_specs=pl.BlockSpec((1, C, tn), lambda b, j: (b, 0, j)),
        compiler_params=pltpu.CompilerParams(
            dimension_semantics=("parallel", "parallel")),
    )(hmax, hmin, x32, scale.reshape(C, 1), shift.reshape(C, 1))
    return out


if __name__ == "__main__":
    B, C, N, K = 2, 16, 64, 9
    key = jax.random.PRNGKey(0)
    kx, kw, kg, kb = jax.random.split(key, 4)

    # PyTorch-layout input (B, C, N): per-point feature vectors.
    x = jax.random.normal(kx, (B, C, N), dtype=jnp.float32)

    # Conv2d(2C->C, 1x1, bias=False) weight squeezed to (C, 2C); BN affine params.
    w = jax.random.normal(kw, (C, 2 * C), dtype=jnp.float32) * (1.0 / jnp.sqrt(2.0 * C))
    gamma = 1.0 + 0.1 * jax.random.normal(kg, (C,), dtype=jnp.float32)
    beta = 0.1 * jax.random.normal(kb, (C,), dtype=jnp.float32)

    out = res_dyn_block_2d(x, w, gamma, beta, k=K, dilation=1, res_scale=1.0)
    out = jax.block_until_ready(out)
    assert out.shape == (B, C, N) and out.dtype == jnp.float32
    assert bool(jnp.all(jnp.isfinite(out)))
    print("KERNEL_OK")
</pallas_src>

<mosaic_0001>
module attributes {stable_mosaic.version = 11 : i64} {
  func.func @_neg_dist_kernel(%arg0: i32, %arg1: i32, %arg2: memref<1x16x64xbf16, #tpu.memory_space<vmem>>, %arg3: memref<1x16x64xbf16, #tpu.memory_space<vmem>>, %arg4: memref<1x1x64xf32, #tpu.memory_space<vmem>>, %arg5: memref<1x64x64xf32, #tpu.memory_space<vmem>>) attributes {dimension_semantics = [#tpu.dimension_semantics<parallel>, #tpu.dimension_semantics<parallel>], iteration_bounds = array<i64: 2, 1>, scalar_prefetch = 0 : i64, scratch_operands = 0 : i64, tpu.core_type = #tpu.core_type<tc>, window_params = [{transform_indices = @transform_0, window_bounds = array<i64: 1, 16, 64>}, {transform_indices = @transform_1, window_bounds = array<i64: 1, 16, 64>}, {transform_indices = @transform_2, window_bounds = array<i64: 1, 1, 64>}, {transform_indices = @transform_3, window_bounds = array<i64: 1, 64, 64>}]} {
    %c0 = arith.constant 0 : index
    %c0_0 = arith.constant 0 : index
    %c0_1 = arith.constant 0 : index
    %0 = vector.load %arg2[%c0, %c0_0, %c0_1] : memref<1x16x64xbf16, #tpu.memory_space<vmem>>, vector<1x16x64xbf16>
    %1 = vector.shape_cast %0 : vector<1x16x64xbf16> to vector<16x64xbf16>
    %c0_2 = arith.constant 0 : index
    %c0_3 = arith.constant 0 : index
    %c0_4 = arith.constant 0 : index
    %2 = vector.load %arg3[%c0_2, %c0_3, %c0_4] : memref<1x16x64xbf16, #tpu.memory_space<vmem>>, vector<1x16x64xbf16>
    %3 = vector.shape_cast %2 : vector<1x16x64xbf16> to vector<16x64xbf16>
    %cst = arith.constant dense<0.000000e+00> : vector<64x64xf32>
    %4 = tpu.matmul %1, %3, %cst {dimension_numbers = #tpu.dot_dimension_numbers<[0], [0], [1], [1], [0, 1, 1, 1], [], []>} : vector<16x64xbf16>, vector<16x64xbf16>, vector<64x64xf32> -> vector<64x64xf32>
    %cst_5 = arith.constant 2.000000e+00 : f32
    %5 = vector.broadcast %cst_5 : f32 to vector<64x64xf32>
    %6 = arith.mulf %5, %4 : vector<64x64xf32>
    %c0_6 = arith.constant 0 : index
    %c0_7 = arith.constant 0 : index
    %c0_8 = arith.constant 0 : index
    %7 = vector.load %arg4[%c0_6, %c0_7, %c0_8] : memref<1x1x64xf32, #tpu.memory_space<vmem>>, vector<1x1x64xf32>
    %8 = vector.shape_cast %7 : vector<1x1x64xf32> to vector<1x64xf32>
    %9 = vector.broadcast %8 : vector<1x64xf32> to vector<64x64xf32>
    %10 = arith.subf %6, %9 : vector<64x64xf32>
    %c0_9 = arith.constant 0 : index
    %c0_10 = arith.constant 0 : index
    %c0_11 = arith.constant 0 : index
    %11 = vector.load %arg5[%c0_9, %c0_10, %c0_11] : memref<1x64x64xf32, #tpu.memory_space<vmem>>, vector<1x64x64xf32>
    %12 = vector.shape_cast %11 : vector<1x64x64xf32> to vector<64x64xf32>
    %13 = vector.shape_cast %10 : vector<64x64xf32> to vector<1x64x64xf32>
    tpu.vector_store %arg5[%c0_9, %c0_10, %c0_11], %13 {strides = array<i32>} : memref<1x64x64xf32, #tpu.memory_space<vmem>>, vector<1x64x64xf32>,
    return
  }
  func.func @transform_0(%arg0: i32, %arg1: i32) -> (i32, i32, i32) {
    %c0_i32 = arith.constant 0 : i32
    %c0_i32_0 = arith.constant 0 : i32
    return %arg0, %c0_i32, %arg1 : i32, i32, i32
  }
  func.func @transform_1(%arg0: i32, %arg1: i32) -> (i32, i32, i32) {
    %c0_i32 = arith.constant 0 : i32
    %c0_i32_0 = arith.constant 0 : i32
    %c0_i32_1 = arith.constant 0 : i32
    return %arg0, %c0_i32, %c0_i32_0 : i32, i32, i32
  }
  func.func @transform_2(%arg0: i32, %arg1: i32) -> (i32, i32, i32) {
    %c0_i32 = arith.constant 0 : i32
    %c0_i32_0 = arith.constant 0 : i32
    %c0_i32_1 = arith.constant 0 : i32
    return %arg0, %c0_i32, %c0_i32_0 : i32, i32, i32
  }
  func.func @transform_3(%arg0: i32, %arg1: i32) -> (i32, i32, i32) {
    %c0_i32 = arith.constant 0 : i32
    %c0_i32_0 = arith.constant 0 : i32
    return %arg0, %arg1, %c0_i32 : i32, i32, i32
  }
}

</mosaic_0001>

<llo_original>
// kernel: tpu_custom_call.1
$region0: #{tpu_custom_call.1}
  #allocation0 [shape = 'u32[]', space=smem, size = 0x4, offset = 0x4, fixed_abs, tag = 'smem constant byte address 0x4 - core index']
  #allocation1 [shape = 'u32[144,128]{1,0:T(1,128)}', space=vmem, size = 0x12000, scoped, tag = 'internal scratch']
  %s0 = inlined_call_operand.hbm [shape: bf16[2,16,64], index: 0, kind: input, shape index: {}]
  %s1 = inlined_call_operand.hbm [shape: bf16[2,16,64], index: 1, kind: input, shape index: {}]
  %s2 = inlined_call_operand.vmem [shape: f32[2,1,64], index: 2, kind: input, shape index: {}]
  %s3 = inlined_call_operand.hbm [shape: f32[2,64,64], index: 3, kind: output, shape index: {}]
  %s4 = sld [smem:[#allocation0]]
  $region53: #{tpu_custom_call.1} parent=0
    _
  %s6 = ssub.s32 1, %s4
  %s7 = scalar_select 0, %s6, %s4
  $region1: #{tpu_custom_call.1} parent=0
    #allocation2 [shape = 'u8[8192]{0}', space=vmem, size = 0x2000, scoped, tag = 'input window, operand 0']
    #allocation3 [shape = 's32[2]{0}', space=sflag, size = 0x8, scoped, tag = 'scoped memory for tpu_custom_call.1']
    #allocation4 [shape = 's32[2]{0}', space=sflag, size = 0x8, scoped, tag = 'scoped memory for tpu_custom_call.1']
    #allocation5 [shape = 'u8[8192]{0}', space=vmem, size = 0x2000, scoped, tag = 'input window, operand 1']
    #allocation6 [shape = 's32[2]{0}', space=sflag, size = 0x8, scoped, tag = 'scoped memory for tpu_custom_call.1']
    #allocation7 [shape = 'u8[65536]{0}', space=vmem, size = 0x10000, scoped, tag = 'output window, operand 0']
    %8 = vsyncpa [#allocation3], 0
    %s9 = scalar_lea.sflag [#allocation3], 1
    %10 = vsyncpa %s9, 0
    %11 = vsyncpa [#allocation6], 0
    %s12 = scalar_lea.sflag [#allocation6], 1
    %13 = vsyncpa %s12, 0
    %14 = vsyncpa [#allocation4], 0
    %s15 = scalar_lea.sflag [#allocation4], 1
    %16 = vsyncpa %s15, 0
    loop: start=0, step=1, limit=4
    $region2: #{tpu_custom_call.1} parent=1 // loop_pre_header
      _
    $region3: #{tpu_custom_call.1} parent=1 // loop_header
      %s18 = sphi 0, %s22
      %p19 = scmp.ge.s32.totalorder %s18, 4
      %s25 = sphi 0, %s37
      %s26 = sphi 0, %s33
      %s27 = sphi 0, %s25
      %s28 = sphi 0, %s26
      %s29 = sphi 0, %s27
      %s30 = sphi 0, %s28
      %s42 = sphi 0, %s44
      %s45 = sphi 0, %s42
      %s46 = sphi 0, %s45
      %s62 = sphi 0, %s46
      %s68 = sphi 0, %s70
      %s71 = sphi 0, %s68
      %s72 = sphi 0, %s71
      %s88 = sphi 0, %s72
      %s94 = sphi 0, %s96
      %s97 = sphi 0, %s94
      %s98 = sphi 0, %s97
      %s114 = sphi 0, %s98
      %s122 = sphi 0, %s124
      %s125 = sphi 0, %s122
      %s126 = sphi 0, %s125
      %s142 = sphi 0, %s126
    $region4: #{tpu_custom_call.1} parent=1 // loop_header_branch
      %21 = sbr.rel (%p19) target = $region8
    $region5: #{tpu_custom_call.1} parent=1 // loop_body
      %s23 = ssub.s32 %s18, 1
      %s24 = ssub.s32 %s18, 2
      %s31 = sadd.s32 1, %s26
      %p32 = scmp.ge.s32.totalorder %s31, 1
      %s33 = scalar_select %p32, 0, %s31
      %s34 = sadd.s32 1, %s25
      %s35 = scalar_select %p32, %s34, %s25
      %p36 = scmp.ge.s32.totalorder %s35, 2
      %s37 = scalar_select %p36, 0, %s35
      %s38 = ssub.s32 %s25, %s37
      %s39 = ssub.s32 %s26, %s33
      %s40 = sor.u32 %s38, %s39
      %p41 = scmp.eq.s32.totalorder %s40, 0
      %s43 = sadd.s32 %s42, 1
      %s44 = scalar_select %p41, %s42, %s43
      %p47 = pneg %p41
      %p48 = scmp.eq.s32.totalorder %s18, 1
      %p49 = por %p47, %p48
      %p50 = scmp.ne.s32.totalorder %s42, %s45
      %p51 = scmp.eq.s32.totalorder %s18, 0
      %p52 = por %p50, %p51
      %p53 = scmp.ne.s32.totalorder %s42, %s45
      %p54 = scmp.eq.s32.totalorder %s23, 1
      %p55 = por %p53, %p54
      %p56 = scmp.ne.s32.totalorder %s45, %s46
      %p57 = scmp.eq.s32.totalorder %s23, 0
      %p58 = por %p56, %p57
      %p59 = scmp.ne.s32.totalorder %s45, %s46
      %p60 = scmp.eq.s32.totalorder %s24, 1
      %p61 = por %p59, %p60
      %p63 = scmp.ne.s32.totalorder %s46, %s62
      %p64 = scmp.eq.s32.totalorder %s24, 0
      %p65 = por %p63, %p64
      %s66 = ssub.s32 %s25, %s37
      %p67 = scmp.eq.s32.totalorder %s66, 0
      %s69 = sadd.s32 %s68, 1
      %s70 = scalar_select %p67, %s68, %s69
      %p73 = pneg %p67
      %p74 = scmp.eq.s32.totalorder %s18, 1
      %p75 = por %p73, %p74
      %p76 = scmp.ne.s32.totalorder %s68, %s71
      %p77 = scmp.eq.s32.totalorder %s18, 0
      %p78 = por %p76, %p77
      %p79 = scmp.ne.s32.totalorder %s68, %s71
      %p80 = scmp.eq.s32.totalorder %s23, 1
      %p81 = por %p79, %p80
      %p82 = scmp.ne.s32.totalorder %s71, %s72
      %p83 = scmp.eq.s32.totalorder %s23, 0
      %p84 = por %p82, %p83
      %p85 = scmp.ne.s32.totalorder %s71, %s72
      %p86 = scmp.eq.s32.totalorder %s24, 1
      %p87 = por %p85, %p86
      %p89 = scmp.ne.s32.totalorder %s72, %s88
      %p90 = scmp.eq.s32.totalorder %s24, 0
      %p91 = por %p89, %p90
      %s92 = ssub.s32 %s25, %s37
      %p93 = scmp.eq.s32.totalorder %s92, 0
      %s95 = sadd.s32 %s94, 1
      %s96 = scalar_select %p93, %s94, %s95
      %p99 = pneg %p93
      %p100 = scmp.eq.s32.totalorder %s18, 1
      %p101 = por %p99, %p100
      %p102 = scmp.ne.s32.totalorder %s94, %s97
      %p103 = scmp.eq.s32.totalorder %s18, 0
      %p104 = por %p102, %p103
      %p105 = scmp.ne.s32.totalorder %s94, %s97
      %p106 = scmp.eq.s32.totalorder %s23, 1
      %p107 = por %p105, %p106
      %p108 = scmp.ne.s32.totalorder %s97, %s98
      %p109 = scmp.eq.s32.totalorder %s23, 0
      %p110 = por %p108, %p109
      %p111 = scmp.ne.s32.totalorder %s97, %s98
      %p112 = scmp.eq.s32.totalorder %s24, 1
      %p113 = por %p111, %p112
      %p115 = scmp.ne.s32.totalorder %s98, %s114
      %p116 = scmp.eq.s32.totalorder %s24, 0
      %p117 = por %p115, %p116
      %s118 = ssub.s32 %s25, %s37
      %s119 = ssub.s32 %s26, %s33
      %s120 = sor.u32 %s118, %s119
      %p121 = scmp.eq.s32.totalorder %s120, 0
      %s123 = sadd.s32 %s122, 1
      %s124 = scalar_select %p121, %s122, %s123
      %p127 = pneg %p121
      %p128 = scmp.eq.s32.totalorder %s18, 1
      %p129 = por %p127, %p128
      %p130 = scmp.ne.s32.totalorder %s122, %s125
      %p131 = scmp.eq.s32.totalorder %s18, 0
      %p132 = por %p130, %p131
      %p133 = scmp.ne.s32.totalorder %s122, %s125
      %p134 = scmp.eq.s32.totalorder %s23, 1
      %p135 = por %p133, %p134
      %p136 = scmp.ne.s32.totalorder %s125, %s126
      %p137 = scmp.eq.s32.totalorder %s23, 0
      %p138 = por %p136, %p137
      %p139 = scmp.ne.s32.totalorder %s125, %s126
      %p140 = scmp.eq.s32.totalorder %s24, 1
      %p141 = por %p139, %p140
      %p143 = scmp.ne.s32.totalorder %s126, %s142
      %p144 = scmp.eq.s32.totalorder %s24, 0
      %p145 = por %p143, %p144
      %p146 = scmp.le.s32.totalorder 1, %s18
      %p147 = scmp.lt.s32.totalorder %s18, 3
      %p148 = pnand %p146, %p147
      %p149 = pneg %p148
      // Predicated region
      $region9: #{tpu_custom_call.1} parent=5 // pred_check
        _
      $region10: #{tpu_custom_call.1} parent=5 // pred_check_branch
        %151 = sbr.rel (%p148) target = $region12
      $region11: #{tpu_custom_call.1} parent=5 // pred_region
        %s152 = ssub.s32 %s18, 1
      $region12: #{tpu_custom_call.1} parent=5 // pred_fallthru
        _
      %p153 = scmp.lt.s32.totalorder %s18, 2
      // Predicated region
      $region13: #{tpu_custom_call.1} parent=5 // pred_check
        %p154 = pneg %p153
      $region14: #{tpu_custom_call.1} parent=5 // pred_check_branch
        %156 = sbr.rel (%p154) target = $region16
      $region15: #{tpu_custom_call.1} parent=5 // pred_region
        // Predicated region
        $region17: #{tpu_custom_call.1} parent=15 // pred_check
          %p157 = pneg %p52
        $region18: #{tpu_custom_call.1} parent=15 // pred_check_branch
          %159 = sbr.rel (%p157) target = $region20
        $region19: #{tpu_custom_call.1} parent=15 // pred_region
          %s160 = sand.u32 %s42, 1
          %s161 = scalar_lea.sflag [#allocation3], %s160
          %s162 = sand.u32 %s42, 1
          %s163 = smul.addr %s162, 8
          %s164 = scalar_lea.vmem [#allocation2], %s163
          %s166 = ssub.s32 128, 128
          %167 = vsyncadd %s161, %s166
          %s168 = smul.addr %s25, 2
          %s169 = sadd.s32 %s26, %s168
          %s170 = smul.addr %s169, 64
          %s171 = scalar_lea.hbm %s0, %s170
          %s172 = sshll.u32 %s164, 4
          %s173 = int_to_ptr.vmem [resolvable:$true] %s172
          %178 = dma.hbm_to_vmem [thread:$0]  %s171, 128, %s173, %s161, 64, 64, 4
        $region20: #{tpu_custom_call.1} parent=15 // pred_fallthru
          _
        // Predicated region
        $region21: #{tpu_custom_call.1} parent=15 // pred_check
          %p179 = pneg %p78
        $region22: #{tpu_custom_call.1} parent=15 // pred_check_branch
          %181 = sbr.rel (%p179) target = $region24
        $region23: #{tpu_custom_call.1} parent=15 // pred_region
          %s182 = sand.u32 %s68, 1
          %s183 = scalar_lea.sflag [#allocation6], %s182
          %s184 = sand.u32 %s68, 1
          %s185 = smul.addr %s184, 8
          %s186 = scalar_lea.vmem [#allocation5], %s185
          %s188 = ssub.s32 128, 128
          %189 = vsyncadd %s183, %s188
          %s190 = smul.addr %s25, 2
          %s191 = smul.addr %s190, 64
          %s192 = scalar_lea.hbm %s1, %s191
          %s193 = sshll.u32 %s186, 4
          %s194 = int_to_ptr.vmem [resolvable:$true] %s193
          %199 = dma.hbm_to_vmem [thread:$0]  %s192, 128, %s194, %s183, 64, 64, 4
        $region24: #{tpu_custom_call.1} parent=15 // pred_fallthru
          _
        // Predicated region
        $region25: #{tpu_custom_call.1} parent=15 // pred_check
          %p200 = pneg %p104
        $region26: #{tpu_custom_call.1} parent=15 // pred_check_branch
          %202 = sbr.rel (%p200) target = $region28
        $region27: #{tpu_custom_call.1} parent=15 // pred_region
          %p203 = scmp.lt.s32.totalorder %s25, 1
          %s204 = scalar_select %p203, %s25, 1
          %s205 = scalar_lea.vmem %s2, %s204
        $region28: #{tpu_custom_call.1} parent=15 // pred_fallthru
          _
      $region16: #{tpu_custom_call.1} parent=5 // pred_fallthru
        _
      %p206 = scmp.le.s32.totalorder 1, %s18
      %p207 = scmp.lt.s32.totalorder %s18, 3
      %p208 = pnand %p206, %p207
      %p209 = pneg %p208
      // Predicated region
      $region29: #{tpu_custom_call.1} parent=5 // pred_check
        _
      $region30: #{tpu_custom_call.1} parent=5 // pred_check_branch
        %211 = sbr.rel (%p208) target = $region32
      $region31: #{tpu_custom_call.1} parent=5 // pred_region
        %s212 = ssub.s32 %s18, 1
        %s213 = sand.u32 %s45, 1
        %s214 = scalar_lea.sflag [#allocation3], %s213
        %s215 = sand.u32 %s45, 1
        %s216 = smul.addr %s215, 8
        %s217 = scalar_lea.vmem [#allocation2], %s216
        // Predicated region
        $region33: #{tpu_custom_call.1} parent=31 // pred_check
          %p218 = pneg %p58
        $region34: #{tpu_custom_call.1} parent=31 // pred_check_branch
          %220 = sbr.rel (%p218) target = $region36
        $region35: #{tpu_custom_call.1} parent=31 // pred_region
          %221 = dma.done %s214, 128
        $region36: #{tpu_custom_call.1} parent=31 // pred_fallthru
          _
        %s222 = sand.u32 %s71, 1
        %s223 = scalar_lea.sflag [#allocation6], %s222
        %s224 = sand.u32 %s71, 1
        %s225 = smul.addr %s224, 8
        %s226 = scalar_lea.vmem [#allocation5], %s225
        // Predicated region
        $region37: #{tpu_custom_call.1} parent=31 // pred_check
          %p227 = pneg %p84
        $region38: #{tpu_custom_call.1} parent=31 // pred_check_branch
          %229 = sbr.rel (%p227) target = $region40
        $region39: #{tpu_custom_call.1} parent=31 // pred_region
          %230 = dma.done %s223, 128
        $region40: #{tpu_custom_call.1} parent=31 // pred_fallthru
          _
        %s231 = sand.u32 %s45, 1
        %s232 = scalar_lea.sflag [#allocation3], %s231
        %s233 = sand.u32 %s45, 1
        %s234 = smul.addr %s233, 8
        %s235 = scalar_lea.vmem [#allocation2], %s234
        %p236 = pneg %p58
        %p237 = pneg %p55
        %s238 = sand.u32 %s71, 1
        %s239 = scalar_lea.sflag [#allocation6], %s238
        %s240 = sand.u32 %s71, 1
        %s241 = smul.addr %s240, 8
        %s242 = scalar_lea.vmem [#allocation5], %s241
        %p243 = pneg %p84
        %p244 = pneg %p81
        %p245 = scmp.lt.s32.totalorder %s27, 1
        %s246 = scalar_select %p245, %s27, 1
        %s247 = scalar_lea.vmem %s2, %s246
        %p248 = pneg %p110
        %p249 = pneg %p107
        %p250 = pneg %p138
        %p251 = pneg %p135
        %s252 = sand.u32 %s125, 1
        %s253 = scalar_lea.sflag [#allocation4], %s252
        %s254 = sand.u32 %s125, 1
        %s255 = smul.addr %s254, 64
        %s256 = scalar_lea.vmem [#allocation7], %s255
        %p257 = scmp.lt.s32.totalorder %s27, 1
        %s258 = scalar_select %p257, %s27, 1
        %s259 = scalar_lea.vmem %s2, %s258
        %s260 = smul.u32 8, %s28
        %v262 = vld [vmem:[%s217] sm:$0xf]
        %v263 = vld [vmem:[%s217 + $0x4] sm:$0xf]
        %v264 = vld [vmem:[%s226] sm:$0xf]
        %v265 = vld [vmem:[%s226 + $0x4] sm:$0xf]
        %v268 = vunpack.c.l.b16 %v262
        %v269 = vunpack.c.l.b16 %v263
        %v270 = vpack.c.b16 %v269, %v268
        %272 = vxpose.xlu0.c.b16.start [1/8] %v270, 128
        %273 = vxpose.xlu0.c.b16.cont [2/8] 0, 128
        %274 = vxpose.xlu0.c.b16.cont [3/8] 0, 128
        %275 = vxpose.xlu0.c.b16.cont [4/8] 0, 128
        %276 = vxpose.xlu0.c.b16.cont [5/8] 0, 128
        %277 = vxpose.xlu0.c.b16.cont [6/8] 0, 128
        %278 = vxpose.xlu0.c.b16.cont [7/8] 0, 128
        %279 = vxpose.xlu0.c.b16.end [8/8] 0, 128
        %v280 = vpop.trf.xlu0
        %v281 = vpop.trf.xlu0
        %v282 = vpop.trf.xlu0
        %v283 = vpop.trf.xlu0
        %v284 = vpop.trf.xlu0
        %v285 = vpop.trf.xlu0
        %v286 = vpop.trf.xlu0
        %v287 = vpop.trf.xlu0
        %v290 = vunpack.c.l.b16 %v264
        %v291 = vunpack.c.l.b16 %v265
        %v292 = vpack.c.b16 %v291, %v290
        %vm294 = vcmask 130048
        %v296 = vsel %vm294, %v280, 0
        %v299 = vsel %vm294, %v281, 0
        %v302 = vsel %vm294, %v282, 0
        %v305 = vsel %vm294, %v283, 0
        %307 = vmatprep.subr.bf16.mxu0 0
        %308 = vmatpush1.bf16.msra.mxu0 0
        %309 = vmatprep.subr.bf16.mxu0 0
        %310 = vmatpush1.bf16.msra.mxu0 0
        %311 = vmatprep.subr.bf16.mxu0 0
        %312 = vmatpush1.bf16.msra.mxu0 0
        %313 = vmatprep.subr.bf16.mxu0 0
        %314 = vmatpush1.bf16.msra.mxu0 0
        %315 = vmatprep.subr.bf16.mxu0 0
        %316 = vmatpush1.bf16.msra.mxu0 0
        %317 = vmatprep.subr.bf16.mxu0 0
        %318 = vmatpush1.bf16.msra.mxu0 0
        %319 = vmatprep.subr.bf16.mxu0 0
        %320 = vmatpush1.bf16.msra.mxu0 0
        %321 = vmatprep.subr.bf16.mxu0 0
        %322 = vmatpush1.bf16.msra.mxu0 %v292
        %323 = vmatprep.subr.bf16.mxu0 0
        %324 = vmatpush2.bf16.msra.mxu0 0
        %325 = vmatprep.subr.bf16.mxu0 0
        %326 = vmatpush2.bf16.msra.mxu0 0
        %327 = vmatprep.subr.bf16.mxu0 0
        %328 = vmatpush2.bf16.msra.mxu0 0
        %329 = vmatprep.subr.bf16.mxu0 0
        %330 = vmatpush2.bf16.msra.mxu0 0
        %331 = vmatprep.subr.bf16.mxu0 0
        %332 = vmatpush2.bf16.msra.mxu0 0
        %333 = vmatprep.subr.bf16.mxu0 0
        %334 = vmatpush2.bf16.msra.mxu0 0
        %335 = vmatprep.subr.bf16.mxu0 0
        %336 = vmatpush2.bf16.msra.mxu0 0
        %337 = vmatprep.subr.bf16.mxu0 0
        %338 = vmatpush2.bf16.msra.mxu0 0
        %339 = vmatprep.mubr.bf16.mxu0 0
        %340 = vmatmul.mubr.bf16.gmra.mxu0 %v296
        %v341 = vpop.f32.mrf.mxu0
        %v342 = vadd.f32 0.0, %v341
        %v343 = vpop.f32.mrf.mxu0
        %v344 = vpop.f32.mrf.mxu0
        %v345 = vadd.f32 0.0, %v344
        %v346 = vpop.f32.mrf.mxu0
        %347 = vmatprep.mubr.bf16.mxu0 0
        %348 = vmatmul.mubr.bf16.gmra.mxu0 %v299
        %v349 = vpop.f32.mrf.mxu0
        %v350 = vadd.f32 0.0, %v349
        %v351 = vpop.f32.mrf.mxu0
        %v352 = vpop.f32.mrf.mxu0
        %v353 = vadd.f32 0.0, %v352
        %v354 = vpop.f32.mrf.mxu0
        %355 = vmatprep.mubr.bf16.mxu0 0
        %356 = vmatmul.mubr.bf16.gmra.mxu0 %v302
        %v357 = vpop.f32.mrf.mxu0
        %v358 = vadd.f32 0.0, %v357
        %v359 = vpop.f32.mrf.mxu0
        %v360 = vpop.f32.mrf.mxu0
        %v361 = vadd.f32 0.0, %v360
        %v362 = vpop.f32.mrf.mxu0
        %363 = vmatprep.mubr.bf16.mxu0 0
        %364 = vmatmul.mubr.bf16.gmra.mxu0 %v305
        %v365 = vpop.f32.mrf.mxu0
        %v366 = vadd.f32 0.0, %v365
        %v367 = vpop.f32.mrf.mxu0
        %v368 = vpop.f32.mrf.mxu0
        %v369 = vadd.f32 0.0, %v368
        %v370 = vpop.f32.mrf.mxu0
        %371 = vdwg.mxu0
        %v372 = vmul.f32 %v342, 2.0
        %v373 = vmul.f32 %v345, 2.0
        %v374 = vmul.f32 %v350, 2.0
        %v375 = vmul.f32 %v353, 2.0
        %v376 = vmul.f32 %v358, 2.0
        %v377 = vmul.f32 %v361, 2.0
        %v378 = vmul.f32 %v366, 2.0
        %v379 = vmul.f32 %v369, 2.0
        %v380 = vld [vmem:[%s259] sm:$0x1]
        %v382 = vlaneseq
        %v383 = vshrl.u32 %v382, 7
        %v384 = vsub.s32 0, %v383
        %v385 = vrot.slane %v380, %v384
        %v387 = vsub.f32 %v372, %v385
        %v388 = vsub.f32 %v373, %v385
        %v389 = vsub.f32 %v374, %v385
        %v390 = vsub.f32 %v375, %v385
        %v391 = vsub.f32 %v376, %v385
        %v392 = vsub.f32 %v377, %v385
        %v393 = vsub.f32 %v378, %v385
        %v394 = vsub.f32 %v379, %v385
        %vm395 = vcmask 523264
        %396 = vst.msk [vmem:[%s256] sm:$0xff] %vm395, %v387
        %397 = vst.msk [vmem:[%s256 + $0x8] sm:$0xff] %vm395, %v388
        %398 = vst.msk [vmem:[%s256 + $0x10] sm:$0xff] %vm395, %v389
        %399 = vst.msk [vmem:[%s256 + $0x18] sm:$0xff] %vm395, %v390
        %400 = vst.msk [vmem:[%s256 + $0x20] sm:$0xff] %vm395, %v391
        %401 = vst.msk [vmem:[%s256 + $0x28] sm:$0xff] %vm395, %v392
        %402 = vst.msk [vmem:[%s256 + $0x30] sm:$0xff] %vm395, %v393
        %403 = vst.msk [vmem:[%s256 + $0x38] sm:$0xff] %vm395, %v394
        %s404 = sand.u32 %s125, 1
        %s405 = scalar_lea.sflag [#allocation4], %s404
        %s406 = sand.u32 %s125, 1
        %s407 = smul.addr %s406, 64
        %s408 = scalar_lea.vmem [#allocation7], %s407
        // Predicated region
        $region41: #{tpu_custom_call.1} parent=31 // pred_check
          %p409 = pneg %p135
        $region42: #{tpu_custom_call.1} parent=31 // pred_check_branch
          %411 = sbr.rel (%p409) target = $region44
        $region43: #{tpu_custom_call.1} parent=31 // pred_region
          %s412 = smul.u32 8, %s28
          %s414 = ssub.s32 1024, 1024
          %415 = vsyncadd %s405, %s414
          %s416 = smul.addr %s27, 8
          %s417 = sadd.s32 %s412, %s416
          %s418 = smul.addr %s417, 128
          %s419 = scalar_lea.hbm %s3, %s418
          %s420 = sshll.u32 %s408, 4
          %s421 = int_to_ptr.vmem [resolvable:$true] %s420
          %426 = dma.vmem_to_hbm [thread:$0]  %s421, 1024, %s419, %s405, 128, 128, 8
        $region44: #{tpu_custom_call.1} parent=31 // pred_fallthru
          _
      $region32: #{tpu_custom_call.1} parent=5 // pred_fallthru
        _
      %p427 = scmp.le.s32.totalorder 2, %s18
      // Predicated region
      $region45: #{tpu_custom_call.1} parent=5 // pred_check
        %p428 = pneg %p427
      $region46: #{tpu_custom_call.1} parent=5 // pred_check_branch
        %430 = sbr.rel (%p428) target = $region48
      $region47: #{tpu_custom_call.1} parent=5 // pred_region
        %s431 = ssub.s32 %s18, 2
        // Predicated region
        $region49: #{tpu_custom_call.1} parent=47 // pred_check
          %p432 = pneg %p141
        $region50: #{tpu_custom_call.1} parent=47 // pred_check_branch
          %434 = sbr.rel (%p432) target = $region52
        $region51: #{tpu_custom_call.1} parent=47 // pred_region
          %s435 = sand.u32 %s126, 1
          %s436 = scalar_lea.sflag [#allocation4], %s435
          %s437 = sand.u32 %s126, 1
          %s438 = smul.addr %s437, 64
          %s439 = scalar_lea.vmem [#allocation7], %s438
          %440 = dma.done %s436, 1024
        $region52: #{tpu_custom_call.1} parent=47 // pred_fallthru
          _
      $region48: #{tpu_custom_call.1} parent=5 // pred_fallthru
        _
    $region6: #{tpu_custom_call.1} parent=1 // loop_footer
      %s22 = sadd.s32 1, %s18
    $region7: #{tpu_custom_call.1} parent=1 // loop_footer_branch
      %17 = sbr.rel target = $region3
    $region8: #{tpu_custom_call.1} parent=1 // loop_exit
      _
    %441 = vsyncpa [#allocation3], 1
    %s442 = scalar_lea.sflag [#allocation3], 1
    %443 = vsyncpa %s442, 1
    %444 = vsyncpa [#allocation6], 1
    %s445 = scalar_lea.sflag [#allocation6], 1
    %446 = vsyncpa %s445, 1
    %447 = vsyncpa [#allocation4], 1
    %s448 = scalar_lea.sflag [#allocation4], 1
    %449 = vsyncpa %s448, 1

</llo_original>
